<compile_context>
chip_gen: v6e
topology: v6e:2x2x1
jax: 0.10.0
libtpu: 0.0.40
codegen_flags: <defaults>
</compile_context>

<pallas_src>
import functools

import jax
import jax.numpy as jnp
from jax.experimental import pallas as pl
from jax.experimental.pallas import tpu as pltpu


def _round_up(a, b):
    return (a + b - 1) // b * b


def _shapelet_conv_kernel(x_ref, w_ref, b_ref, o_ref, *,
                          shapelet_size, halo, w_lanes):
    """One batch block (Nb whole batches, W = Nb*L folded lanes) per grid step.

    x_ref: (C, W)     bf16  folded (batch*time) input lanes for this block
    w_ref: (S, O, C)  bf16  conv weights, tap-major
    b_ref: (O, 1)     f32   conv bias
    o_ref: (O, W)     f32   folded output lanes for this block
    """
    xb = x_ref[...]                                            # (C, W)
    c = xb.shape[0]
    # Left padding synthesized in VMEM: a 128-aligned zero slab, so every tap
    # below is a static slice of a lane-dense value (no HBM left-pad copy).
    # Correctness of block-local padding: each per-batch segment has length
    # L >= T + S, so the last S lanes of the previous batch are always zero.
    xe = jnp.concatenate(
        [jnp.zeros((c, halo), dtype=xb.dtype), xb], axis=-1)   # (C, halo + W)

    wv = w_ref[...]                                            # (S, O, C)
    o_dim = o_ref.shape[0]
    acc = jnp.zeros((o_dim, w_lanes), dtype=jnp.float32)
    # Conv1d with left pad S as S shifted MXU pushes over the folded lanes:
    #   out[o, j] = bias[o] + sum_k sum_c W[o, c, k] * x_folded[c, j + k - S]
    for k in range(shapelet_size):                             # static, small
        d = shapelet_size - k                                  # right-shift
        acc = acc + jnp.dot(
            wv[k],                                             # (O, C)
            xe[:, halo - d: halo - d + w_lanes],               # (C, W)
            preferred_element_type=jnp.float32,
        )
    o_ref[...] = (acc + b_ref[...]).astype(o_ref.dtype)


def shapelet_convolution(x, weight, bias, shapelet_size, *,
                         lane_budget=512, compute_dtype=jnp.bfloat16):
    """x: (N, C, T), weight: (O, C, S), bias: (O,). Returns (N, O, T+1)."""
    n, c, t = x.shape
    o = weight.shape[0]
    s = shapelet_size
    out_len = t + 1

    # Per-batch lane-dense segment length.  L >= T + S guarantees the tail of
    # every batch segment is zero, so blocks never need their left neighbour.
    l_seg = _round_up(t + s, 128)
    halo = _round_up(s, 128)

    # ---- wrapper-side layout plumbing (one fused relayout, no left pad) ----
    xt = jnp.transpose(x, (1, 0, 2)).astype(compute_dtype)           # (C, N, T)
    xseg = jnp.pad(xt, ((0, 0), (0, 0), (0, l_seg - t)))             # (C, N, L)
    xflat = xseg.reshape(c, n * l_seg)                               # (C, N*L)
    w_taps = jnp.transpose(weight, (2, 0, 1)).astype(compute_dtype)  # (S, O, C)
    b2 = bias.reshape(o, 1).astype(jnp.float32)                      # (O, 1)

    # Batches per grid step: as many as fit the lane budget, but keep >= 2 grid
    # steps when possible so both v7x TensorCores get a "parallel" block.
    nb = max(1, min(n, max(1, lane_budget // l_seg)))
    if n >= 2:
        nb = min(nb, (n + 1) // 2)
    while n % nb:
        nb -= 1
    w_lanes = nb * l_seg                                             # mult of 128
    num_blocks = n // nb

    kernel = functools.partial(
        _shapelet_conv_kernel, shapelet_size=s, halo=halo, w_lanes=w_lanes)

    # Explicit scoped-VMEM budget: generous for big time blocks, but well under
    # v7x's 64 MiB physical VMEM.
    blk_bytes = c * w_lanes * 2 + o * w_lanes * 4
    vmem_limit = int(min(56 * 2**20, max(32 * 2**20, 8 * blk_bytes)))

    out_flat = pl.pallas_call(
        kernel,
        out_shape=jax.ShapeDtypeStruct((o, n * l_seg), jnp.float32),
        grid_spec=pltpu.PrefetchScalarGridSpec(
            num_scalar_prefetch=0,
            grid=(num_blocks,),
            in_specs=[
                pl.BlockSpec((c, w_lanes), lambda j: (0, j)),
                pl.BlockSpec((s, o, c), lambda j: (0, 0, 0)),
                pl.BlockSpec((o, 1), lambda j: (0, 0)),
            ],
            out_specs=pl.BlockSpec((o, w_lanes), lambda j: (0, j)),
        ),
        compiler_params=pltpu.CompilerParams(
            dimension_semantics=("parallel",),
            vmem_limit_bytes=vmem_limit,
        ),
    )(xflat, w_taps, b2)

    out = out_flat.reshape(o, n, l_seg)
    out = jnp.transpose(out, (1, 0, 2))[:, :, :out_len]              # (N, O, T+1)
    return out.astype(x.dtype)


def _reference(x, weight, bias, shapelet_size):
    """Pure-JAX reference (same math as PyTorch pad + Conv1d)."""
    xp = jnp.pad(x, ((0, 0), (0, 0), (shapelet_size, 0)))
    out = jax.lax.conv_general_dilated(
        xp, weight, window_strides=(1,), padding="VALID",
        dimension_numbers=("NCH", "OIH", "NCH"),
        precision=jax.lax.Precision.HIGHEST)
    return out + bias[None, :, None]


if __name__ == "__main__":
    # Module hyper-params (synthetic, deterministic init).
    shapelet_size = 3
    in_channels = 4
    n_shapelets_per_size = 8

    batch = 2
    seq_len = 16

    key = jax.random.PRNGKey(0)
    kx, kw, kb = jax.random.split(key, 3)

    x = jax.random.normal(kx, (batch, in_channels, seq_len), dtype=jnp.float32)

    # Deterministic Conv1d-style init: U(-bound, bound), bound = 1/sqrt(C*S).
    fan_in = in_channels * shapelet_size
    bound = 1.0 / jnp.sqrt(jnp.float32(fan_in))
    weight = jax.random.uniform(
        kw, (n_shapelets_per_size, in_channels, shapelet_size),
        minval=-bound, maxval=bound, dtype=jnp.float32)
    bias = jax.random.uniform(
        kb, (n_shapelets_per_size,), minval=-bound, maxval=bound,
        dtype=jnp.float32)

    out = shapelet_convolution(x, weight, bias, shapelet_size)
    out = jax.block_until_ready(out)
    assert out.shape == (batch, n_shapelets_per_size, seq_len + 1), out.shape

    # Strict check: identical bf16-quantized inputs, exact-f32 reference
    # (isolates layout/indexing correctness from the bf16 cast).
    xq = x.astype(jnp.bfloat16).astype(jnp.float32)
    wq = weight.astype(jnp.bfloat16).astype(jnp.float32)
    ref_q = _reference(xq, wq, bias, shapelet_size)
    assert jnp.allclose(out, ref_q, atol=1e-4, rtol=1e-4), \
        "mismatch vs bf16-quantized reference"

    # Sanity check vs the full-f32 PyTorch-equivalent reference (bf16 inputs
    # introduce only a small quantization error).
    ref = _reference(x, weight, bias, shapelet_size)
    assert jnp.allclose(out, ref, atol=5e-2, rtol=5e-2), \
        "mismatch vs f32 reference"

    print("KERNEL_OK")
</pallas_src>

<mosaic_0001>
module attributes {stable_mosaic.version = 11 : i64} {
  func.func @_shapelet_conv_kernel(%arg0: i32, %arg1: memref<4x128xbf16, #tpu.memory_space<vmem>>, %arg2: memref<3x8x4xbf16, #tpu.memory_space<vmem>>, %arg3: memref<8x1xf32, #tpu.memory_space<vmem>>, %arg4: memref<8x128xf32, #tpu.memory_space<vmem>>) attributes {dimension_semantics = [#tpu.dimension_semantics<parallel>], iteration_bounds = array<i64: 2>, scalar_prefetch = 0 : i64, scratch_operands = 0 : i64, tpu.core_type = #tpu.core_type<tc>, window_params = [{transform_indices = @transform_0, window_bounds = array<i64: 4, 128>}, {pipeline_mode = #tpu.pipeline_mode<synchronous>, transform_indices = @transform_1, window_bounds = array<i64: 3, 8, 4>}, {pipeline_mode = #tpu.pipeline_mode<synchronous>, transform_indices = @transform_2, window_bounds = array<i64: 8, 1>}, {transform_indices = @transform_3, window_bounds = array<i64: 8, 128>}]} {
    %c0 = arith.constant 0 : index
    %c0_0 = arith.constant 0 : index
    %0 = vector.load %arg1[%c0, %c0_0] : memref<4x128xbf16, #tpu.memory_space<vmem>>, vector<4x128xbf16>
    %cst = arith.constant 0.000000e+00 : bf16
    %1 = vector.broadcast %cst : bf16 to vector<4x128xbf16>
    %2 = tpu.concatenate %1, %0 in 1 : vector<4x128xbf16>, vector<4x128xbf16> -> vector<4x256xbf16>
    %c0_1 = arith.constant 0 : index
    %c0_2 = arith.constant 0 : index
    %c0_3 = arith.constant 0 : index
    %3 = vector.load %arg2[%c0_1, %c0_2, %c0_3] : memref<3x8x4xbf16, #tpu.memory_space<vmem>>, vector<3x8x4xbf16>
    %cst_4 = arith.constant 0.000000e+00 : f32
    %4 = vector.broadcast %cst_4 : f32 to vector<8x128xf32>
    %5 = vector.extract_strided_slice %3 {offsets = [0, 0, 0], sizes = [1, 8, 4], strides = [1, 1, 1]} : vector<3x8x4xbf16> to vector<1x8x4xbf16>
    %6 = vector.shape_cast %5 : vector<1x8x4xbf16> to vector<8x4xbf16>
    %7 = vector.extract_strided_slice %2 {offsets = [0, 125], sizes = [4, 128], strides = [1, 1]} : vector<4x256xbf16> to vector<4x128xbf16>
    %cst_5 = arith.constant dense<0.000000e+00> : vector<8x128xf32>
    %8 = tpu.matmul %6, %7, %cst_5 {dimension_numbers = #tpu.dot_dimension_numbers<[1], [0], [0], [1], [0, 0, 1, 1], [], []>} : vector<8x4xbf16>, vector<4x128xbf16>, vector<8x128xf32> -> vector<8x128xf32>
    %9 = arith.addf %4, %8 : vector<8x128xf32>
    %10 = vector.extract_strided_slice %3 {offsets = [1, 0, 0], sizes = [1, 8, 4], strides = [1, 1, 1]} : vector<3x8x4xbf16> to vector<1x8x4xbf16>
    %11 = vector.shape_cast %10 : vector<1x8x4xbf16> to vector<8x4xbf16>
    %12 = vector.extract_strided_slice %2 {offsets = [0, 126], sizes = [4, 128], strides = [1, 1]} : vector<4x256xbf16> to vector<4x128xbf16>
    %cst_6 = arith.constant dense<0.000000e+00> : vector<8x128xf32>
    %13 = tpu.matmul %11, %12, %cst_6 {dimension_numbers = #tpu.dot_dimension_numbers<[1], [0], [0], [1], [0, 0, 1, 1], [], []>} : vector<8x4xbf16>, vector<4x128xbf16>, vector<8x128xf32> -> vector<8x128xf32>
    %14 = arith.addf %9, %13 : vector<8x128xf32>
    %15 = vector.extract_strided_slice %3 {offsets = [2, 0, 0], sizes = [1, 8, 4], strides = [1, 1, 1]} : vector<3x8x4xbf16> to vector<1x8x4xbf16>
    %16 = vector.shape_cast %15 : vector<1x8x4xbf16> to vector<8x4xbf16>
    %17 = vector.extract_strided_slice %2 {offsets = [0, 127], sizes = [4, 128], strides = [1, 1]} : vector<4x256xbf16> to vector<4x128xbf16>
    %cst_7 = arith.constant dense<0.000000e+00> : vector<8x128xf32>
    %18 = tpu.matmul %16, %17, %cst_7 {dimension_numbers = #tpu.dot_dimension_numbers<[1], [0], [0], [1], [0, 0, 1, 1], [], []>} : vector<8x4xbf16>, vector<4x128xbf16>, vector<8x128xf32> -> vector<8x128xf32>
    %19 = arith.addf %14, %18 : vector<8x128xf32>
    %c0_8 = arith.constant 0 : index
    %c0_9 = arith.constant 0 : index
    %20 = vector.load %arg3[%c0_8, %c0_9] : memref<8x1xf32, #tpu.memory_space<vmem>>, vector<8x1xf32>
    %21 = vector.broadcast %20 : vector<8x1xf32> to vector<8x128xf32>
    %22 = arith.addf %19, %21 : vector<8x128xf32>
    %c0_10 = arith.constant 0 : index
    %c0_11 = arith.constant 0 : index
    %23 = vector.load %arg4[%c0_10, %c0_11] : memref<8x128xf32, #tpu.memory_space<vmem>>, vector<8x128xf32>
    tpu.vector_store %arg4[%c0_10, %c0_11], %22 {strides = array<i32>} : memref<8x128xf32, #tpu.memory_space<vmem>>, vector<8x128xf32>,
    return
  }
  func.func @transform_0(%arg0: i32) -> (i32, i32) {
    %c0_i32 = arith.constant 0 : i32
    %c0_i32_0 = arith.constant 0 : i32
    return %c0_i32, %arg0 : i32, i32
  }
  func.func @transform_1(%arg0: i32) -> (i32, i32, i32) {
    %c0_i32 = arith.constant 0 : i32
    %c0_i32_0 = arith.constant 0 : i32
    %c0_i32_1 = arith.constant 0 : i32
    %c0_i32_2 = arith.constant 0 : i32
    return %c0_i32, %c0_i32_0, %c0_i32_1 : i32, i32, i32
  }
  func.func @transform_2(%arg0: i32) -> (i32, i32) {
    %c0_i32 = arith.constant 0 : i32
    %c0_i32_0 = arith.constant 0 : i32
    %c0_i32_1 = arith.constant 0 : i32
    return %c0_i32, %c0_i32_0 : i32, i32
  }
  func.func @transform_3(%arg0: i32) -> (i32, i32) {
    %c0_i32 = arith.constant 0 : i32
    %c0_i32_0 = arith.constant 0 : i32
    return %c0_i32, %arg0 : i32, i32
  }
}

</mosaic_0001>

<llo_original>
// kernel: tpu_custom_call.1
$region0: #{tpu_custom_call.1}
  #allocation0 [shape = 'u32[]', space=smem, size = 0x4, offset = 0x4, fixed_abs, tag = 'smem constant byte address 0x4 - core index']
  #allocation1 [shape = 'u32[144,128]{1,0:T(1,128)}', space=vmem, size = 0x12000, scoped, tag = 'internal scratch']
  %s0 = inlined_call_operand.vmem [shape: bf16[4,256], index: 0, kind: input, shape index: {}]
  %s1 = inlined_call_operand.vmem [shape: bf16[3,8,4], index: 1, kind: input, shape index: {}]
  %s2 = inlined_call_operand.vmem [shape: f32[8,1], index: 2, kind: input, shape index: {}]
  %s3 = inlined_call_operand.hbm [shape: f32[8,256], index: 3, kind: output, shape index: {}]
  %s4 = sld [smem:[#allocation0]]
  $region45: #{tpu_custom_call.1} parent=0
    _
  %s6 = ssub.s32 1, %s4
  %s7 = scalar_select 0, %s6, %s4
  $region1: #{tpu_custom_call.1} parent=0
    #allocation2 [shape = 'u8[8192]{0}', space=vmem, size = 0x2000, scoped, tag = 'output window, operand 0']
    #allocation3 [shape = 's32[2]{0}', space=sflag, size = 0x8, scoped, tag = 'scoped memory for tpu_custom_call.1']
    %8 = vsyncpa [#allocation3], 0
    %s9 = scalar_lea.sflag [#allocation3], 1
    %10 = vsyncpa %s9, 0
    loop: start=0, step=1, limit=4
    $region2: #{tpu_custom_call.1} parent=1 // loop_pre_header
      _
    $region3: #{tpu_custom_call.1} parent=1 // loop_header
      %s12 = sphi 0, %s16
      %p13 = scmp.ge.s32.totalorder %s12, 4
      %s22 = sphi 0, %s24
      %s25 = sphi 0, %s22
      %s26 = sphi 0, %s25
      %s42 = sphi 0, %s26
      %s46 = sphi 0, %s46
      %s48 = sphi 0, %s46
      %s49 = sphi 0, %s48
      %s63 = sphi 0, %s49
      %s67 = sphi 0, %s67
      %s69 = sphi 0, %s67
      %s70 = sphi 0, %s69
      %s84 = sphi 0, %s70
      %s90 = sphi 0, %s92
      %s93 = sphi 0, %s90
      %s94 = sphi 0, %s93
      %s110 = sphi 0, %s94
    $region4: #{tpu_custom_call.1} parent=1 // loop_header_branch
      %15 = sbr.rel (%p13) target = $region8
    $region5: #{tpu_custom_call.1} parent=1 // loop_body
      %s17 = ssub.s32 %s12, 1
      %s18 = ssub.s32 %s12, 2
      %s19 = sadd.s32 %s12, 1
      %s20 = ssub.s32 %s12, %s19
      %p21 = scmp.eq.s32.totalorder %s20, 0
      %s23 = sadd.s32 %s22, 1
      %s24 = scalar_select %p21, %s22, %s23
      %p27 = pneg %p21
      %p28 = scmp.eq.s32.totalorder %s12, 1
      %p29 = por %p27, %p28
      %p30 = scmp.ne.s32.totalorder %s22, %s25
      %p31 = scmp.eq.s32.totalorder %s12, 0
      %p32 = por %p30, %p31
      %p33 = scmp.ne.s32.totalorder %s22, %s25
      %p34 = scmp.eq.s32.totalorder %s17, 1
      %p35 = por %p33, %p34
      %p36 = scmp.ne.s32.totalorder %s25, %s26
      %p37 = scmp.eq.s32.totalorder %s17, 0
      %p38 = por %p36, %p37
      %p39 = scmp.ne.s32.totalorder %s25, %s26
      %p40 = scmp.eq.s32.totalorder %s18, 1
      %p41 = por %p39, %p40
      %p43 = scmp.ne.s32.totalorder %s26, %s42
      %p44 = scmp.eq.s32.totalorder %s18, 0
      %p45 = por %p43, %p44
      %s47 = sadd.s32 %s46, 1
      %p50 = scmp.eq.s32.totalorder %s12, 1
      %p51 = scmp.ne.s32.totalorder %s46, %s48
      %p52 = scmp.eq.s32.totalorder %s12, 0
      %p53 = por %p51, %p52
      %p54 = scmp.ne.s32.totalorder %s46, %s48
      %p55 = scmp.eq.s32.totalorder %s17, 1
      %p56 = por %p54, %p55
      %p57 = scmp.ne.s32.totalorder %s48, %s49
      %p58 = scmp.eq.s32.totalorder %s17, 0
      %p59 = por %p57, %p58
      %p60 = scmp.ne.s32.totalorder %s48, %s49
      %p61 = scmp.eq.s32.totalorder %s18, 1
      %p62 = por %p60, %p61
      %p64 = scmp.ne.s32.totalorder %s49, %s63
      %p65 = scmp.eq.s32.totalorder %s18, 0
      %p66 = por %p64, %p65
      %s68 = sadd.s32 %s67, 1
      %p71 = scmp.eq.s32.totalorder %s12, 1
      %p72 = scmp.ne.s32.totalorder %s67, %s69
      %p73 = scmp.eq.s32.totalorder %s12, 0
      %p74 = por %p72, %p73
      %p75 = scmp.ne.s32.totalorder %s67, %s69
      %p76 = scmp.eq.s32.totalorder %s17, 1
      %p77 = por %p75, %p76
      %p78 = scmp.ne.s32.totalorder %s69, %s70
      %p79 = scmp.eq.s32.totalorder %s17, 0
      %p80 = por %p78, %p79
      %p81 = scmp.ne.s32.totalorder %s69, %s70
      %p82 = scmp.eq.s32.totalorder %s18, 1
      %p83 = por %p81, %p82
      %p85 = scmp.ne.s32.totalorder %s70, %s84
      %p86 = scmp.eq.s32.totalorder %s18, 0
      %p87 = por %p85, %p86
      %s88 = ssub.s32 %s12, %s19
      %p89 = scmp.eq.s32.totalorder %s88, 0
      %s91 = sadd.s32 %s90, 1
      %s92 = scalar_select %p89, %s90, %s91
      %p95 = pneg %p89
      %p96 = scmp.eq.s32.totalorder %s12, 1
      %p97 = por %p95, %p96
      %p98 = scmp.ne.s32.totalorder %s90, %s93
      %p99 = scmp.eq.s32.totalorder %s12, 0
      %p100 = por %p98, %p99
      %p101 = scmp.ne.s32.totalorder %s90, %s93
      %p102 = scmp.eq.s32.totalorder %s17, 1
      %p103 = por %p101, %p102
      %p104 = scmp.ne.s32.totalorder %s93, %s94
      %p105 = scmp.eq.s32.totalorder %s17, 0
      %p106 = por %p104, %p105
      %p107 = scmp.ne.s32.totalorder %s93, %s94
      %p108 = scmp.eq.s32.totalorder %s18, 1
      %p109 = por %p107, %p108
      %p111 = scmp.ne.s32.totalorder %s94, %s110
      %p112 = scmp.eq.s32.totalorder %s18, 0
      %p113 = por %p111, %p112
      %p114 = scmp.le.s32.totalorder 1, %s12
      %p115 = scmp.lt.s32.totalorder %s12, 3
      %p116 = pnand %p114, %p115
      %p117 = pneg %p116
      // Predicated region
      $region9: #{tpu_custom_call.1} parent=5 // pred_check
        _
      $region10: #{tpu_custom_call.1} parent=5 // pred_check_branch
        %119 = sbr.rel (%p116) target = $region12
      $region11: #{tpu_custom_call.1} parent=5 // pred_region
        %s120 = ssub.s32 %s12, 1
        // Predicated region
        $region13: #{tpu_custom_call.1} parent=11 // pred_check
          %p121 = pneg %p59
        $region14: #{tpu_custom_call.1} parent=11 // pred_check_branch
          %123 = sbr.rel (%p121) target = $region16
        $region15: #{tpu_custom_call.1} parent=11 // pred_region
          _
        $region16: #{tpu_custom_call.1} parent=11 // pred_fallthru
          _
        // Predicated region
        $region17: #{tpu_custom_call.1} parent=11 // pred_check
          %p124 = pneg %p80
        $region18: #{tpu_custom_call.1} parent=11 // pred_check_branch
          %126 = sbr.rel (%p124) target = $region20
        $region19: #{tpu_custom_call.1} parent=11 // pred_region
          _
        $region20: #{tpu_custom_call.1} parent=11 // pred_fallthru
          _
      $region12: #{tpu_custom_call.1} parent=5 // pred_fallthru
        _
      %p127 = scmp.lt.s32.totalorder %s12, 2
      // Predicated region
      $region21: #{tpu_custom_call.1} parent=5 // pred_check
        %p128 = pneg %p127
      $region22: #{tpu_custom_call.1} parent=5 // pred_check_branch
        %130 = sbr.rel (%p128) target = $region24
      $region23: #{tpu_custom_call.1} parent=5 // pred_region
        // Predicated region
        $region25: #{tpu_custom_call.1} parent=23 // pred_check
          %p131 = pneg %p32
        $region26: #{tpu_custom_call.1} parent=23 // pred_check_branch
          %133 = sbr.rel (%p131) target = $region28
        $region27: #{tpu_custom_call.1} parent=23 // pred_region
          %p134 = scmp.lt.s32.totalorder %s12, 1
          %s135 = scalar_select %p134, %s12, 1
          %s136 = smul.addr %s135, 2
          %s137 = scalar_lea.vmem %s0, %s136
        $region28: #{tpu_custom_call.1} parent=23 // pred_fallthru
          _
      $region24: #{tpu_custom_call.1} parent=5 // pred_fallthru
        _
      %p138 = scmp.le.s32.totalorder 1, %s12
      %p139 = scmp.lt.s32.totalorder %s12, 3
      %p140 = pnand %p138, %p139
      %p141 = pneg %p140
      // Predicated region
      $region29: #{tpu_custom_call.1} parent=5 // pred_check
        _
      $region30: #{tpu_custom_call.1} parent=5 // pred_check_branch
        %143 = sbr.rel (%p140) target = $region32
      $region31: #{tpu_custom_call.1} parent=5 // pred_region
        %s144 = ssub.s32 %s12, 1
        %p145 = scmp.lt.s32.totalorder %s17, 1
        %s146 = scalar_select %p145, %s17, 1
        %s147 = smul.addr %s146, 2
        %s148 = scalar_lea.vmem %s0, %s147
        %p149 = pneg %p38
        %p150 = pneg %p35
        %p151 = pneg %p59
        %p152 = pneg %p56
        %p153 = pneg %p80
        %p154 = pneg %p77
        %p155 = pneg %p106
        %p156 = pneg %p103
        %s157 = sand.u32 %s93, 1
        %s158 = scalar_lea.sflag [#allocation3], %s157
        %s159 = sand.u32 %s93, 1
        %s160 = smul.addr %s159, 8
        %s161 = scalar_lea.vmem [#allocation2], %s160
        %p162 = scmp.lt.s32.totalorder %s17, 1
        %s163 = scalar_select %p162, %s17, 1
        %s164 = smul.addr %s163, 2
        %s165 = scalar_lea.vmem %s0, %s164
        %v167 = vld [vmem:[%s165] sm:$0x3]
        %v168 = vld [vmem:[%s1] sm:$0xf]
        %v169 = vld [vmem:[%s1 + $0x4] sm:$0xf]
        %v170 = vld [vmem:[%s1 + $0x8] sm:$0xf]
        %173 = vrot.lane.b32.xlu0 0, 2
        %v174 = vpop.permute.xlu0 %173
        %175 = vrot.lane.b32.xlu0 %v167, 2
        %v176 = vpop.permute.xlu0 %175
        %vm177 = vcmask 15360
        %v178 = vsel %vm177, %v174, %v176
        %vm179 = vcmask 31744
        %v181 = vsel %vm179, %v169, 0
        %vm183 = vcmask 1041408
        %v185 = vsel %vm183, %v178, 0
        %187 = vmatprep.subr.bf16.mxu0 0
        %188 = vmatpush1.bf16.msra.mxu0 0
        %189 = vmatprep.subr.bf16.mxu0 0
        %190 = vmatpush1.bf16.msra.mxu0 0
        %191 = vmatprep.subr.bf16.mxu0 0
        %192 = vmatpush1.bf16.msra.mxu0 0
        %193 = vmatprep.subr.bf16.mxu0 0
        %194 = vmatpush1.bf16.msra.mxu0 0
        %195 = vmatprep.subr.bf16.mxu0 0
        %196 = vmatpush1.bf16.msra.mxu0 0
        %197 = vmatprep.subr.bf16.mxu0 0
        %198 = vmatpush1.bf16.msra.mxu0 0
        %199 = vmatprep.subr.bf16.mxu0 0
        %200 = vmatpush1.bf16.msra.mxu0 0
        %201 = vmatprep.subr.bf16.mxu0 0
        %202 = vmatpush1.bf16.msra.mxu0 %v185
        %203 = vmatprep.subr.bf16.mxu0 0
        %204 = vmatpush2.bf16.msra.mxu0 0
        %205 = vmatprep.subr.bf16.mxu0 0
        %206 = vmatpush2.bf16.msra.mxu0 0
        %207 = vmatprep.subr.bf16.mxu0 0
        %208 = vmatpush2.bf16.msra.mxu0 0
        %209 = vmatprep.subr.bf16.mxu0 0
        %210 = vmatpush2.bf16.msra.mxu0 0
        %211 = vmatprep.subr.bf16.mxu0 0
        %212 = vmatpush2.bf16.msra.mxu0 0
        %213 = vmatprep.subr.bf16.mxu0 0
        %214 = vmatpush2.bf16.msra.mxu0 0
        %215 = vmatprep.subr.bf16.mxu0 0
        %216 = vmatpush2.bf16.msra.mxu0 0
        %217 = vmatprep.subr.bf16.mxu0 0
        %218 = vmatpush2.bf16.msra.mxu0 0
        %219 = vmatprep.mubr.bf16.mxu0 0
        %220 = vmatmul.mubr.bf16.gmra.mxu0 %v181
        %v221 = vpop.f32.mrf.mxu0
        %v222 = vadd.f32 0.0, %v221
        %v223 = vpop.f32.mrf.mxu0
        %v224 = vpop.f32.mrf.mxu0
        %v225 = vpop.f32.mrf.mxu0
        %226 = vdwg.mxu0
        %227 = vrot.lane.b32.xlu0 0, 3
        %v228 = vpop.permute.xlu0 %227
        %229 = vrot.lane.b32.xlu0 %v167, 3
        %v230 = vpop.permute.xlu0 %229
        %vm231 = vcmask 23552
        %v232 = vsel %vm231, %v228, %v230
        %v234 = vsel %vm179, %v168, 0
        %v237 = vsel %vm183, %v232, 0
        %239 = vmatprep.subr.bf16.mxu0 0
        %240 = vmatpush1.bf16.msra.mxu0 0
        %241 = vmatprep.subr.bf16.mxu0 0
        %242 = vmatpush1.bf16.msra.mxu0 0
        %243 = vmatprep.subr.bf16.mxu0 0
        %244 = vmatpush1.bf16.msra.mxu0 0
        %245 = vmatprep.subr.bf16.mxu0 0
        %246 = vmatpush1.bf16.msra.mxu0 0
        %247 = vmatprep.subr.bf16.mxu0 0
        %248 = vmatpush1.bf16.msra.mxu0 0
        %249 = vmatprep.subr.bf16.mxu0 0
        %250 = vmatpush1.bf16.msra.mxu0 0
        %251 = vmatprep.subr.bf16.mxu0 0
        %252 = vmatpush1.bf16.msra.mxu0 0
        %253 = vmatprep.subr.bf16.mxu0 0
        %254 = vmatpush1.bf16.msra.mxu0 %v237
        %255 = vmatprep.subr.bf16.mxu0 0
        %256 = vmatpush2.bf16.msra.mxu0 0
        %257 = vmatprep.subr.bf16.mxu0 0
        %258 = vmatpush2.bf16.msra.mxu0 0
        %259 = vmatprep.subr.bf16.mxu0 0
        %260 = vmatpush2.bf16.msra.mxu0 0
        %261 = vmatprep.subr.bf16.mxu0 0
        %262 = vmatpush2.bf16.msra.mxu0 0
        %263 = vmatprep.subr.bf16.mxu0 0
        %264 = vmatpush2.bf16.msra.mxu0 0
        %265 = vmatprep.subr.bf16.mxu0 0
        %266 = vmatpush2.bf16.msra.mxu0 0
        %267 = vmatprep.subr.bf16.mxu0 0
        %268 = vmatpush2.bf16.msra.mxu0 0
        %269 = vmatprep.subr.bf16.mxu0 0
        %270 = vmatpush2.bf16.msra.mxu0 0
        %271 = vmatprep.mubr.bf16.mxu0 0
        %272 = vmatmul.mubr.bf16.gmra.mxu0 %v234
        %v273 = vpop.f32.mrf.mxu0
        %v274 = vadd.f32 %v222, %v273
        %v275 = vpop.f32.mrf.mxu0
        %v276 = vpop.f32.mrf.mxu0
        %v277 = vpop.f32.mrf.mxu0
        %278 = vdwg.mxu0
        %279 = vrot.lane.b32.xlu0 0, 1
        %v280 = vpop.permute.xlu0 %279
        %281 = vrot.lane.b32.xlu0 %v167, 1
        %v282 = vpop.permute.xlu0 %281
        %vm283 = vcmask 7168
        %v284 = vsel %vm283, %v280, %v282
        %v286 = vsel %vm179, %v170, 0
        %v289 = vsel %vm183, %v284, 0
        %291 = vmatprep.subr.bf16.mxu0 0
        %292 = vmatpush1.bf16.msra.mxu0 0
        %293 = vmatprep.subr.bf16.mxu0 0
        %294 = vmatpush1.bf16.msra.mxu0 0
        %295 = vmatprep.subr.bf16.mxu0 0
        %296 = vmatpush1.bf16.msra.mxu0 0
        %297 = vmatprep.subr.bf16.mxu0 0
        %298 = vmatpush1.bf16.msra.mxu0 0
        %299 = vmatprep.subr.bf16.mxu0 0
        %300 = vmatpush1.bf16.msra.mxu0 0
        %301 = vmatprep.subr.bf16.mxu0 0
        %302 = vmatpush1.bf16.msra.mxu0 0
        %303 = vmatprep.subr.bf16.mxu0 0
        %304 = vmatpush1.bf16.msra.mxu0 0
        %305 = vmatprep.subr.bf16.mxu0 0
        %306 = vmatpush1.bf16.msra.mxu0 %v289
        %307 = vmatprep.subr.bf16.mxu0 0
        %308 = vmatpush2.bf16.msra.mxu0 0
        %309 = vmatprep.subr.bf16.mxu0 0
        %310 = vmatpush2.bf16.msra.mxu0 0
        %311 = vmatprep.subr.bf16.mxu0 0
        %312 = vmatpush2.bf16.msra.mxu0 0
        %313 = vmatprep.subr.bf16.mxu0 0
        %314 = vmatpush2.bf16.msra.mxu0 0
        %315 = vmatprep.subr.bf16.mxu0 0
        %316 = vmatpush2.bf16.msra.mxu0 0
        %317 = vmatprep.subr.bf16.mxu0 0
        %318 = vmatpush2.bf16.msra.mxu0 0
        %319 = vmatprep.subr.bf16.mxu0 0
        %320 = vmatpush2.bf16.msra.mxu0 0
        %321 = vmatprep.subr.bf16.mxu0 0
        %322 = vmatpush2.bf16.msra.mxu0 0
        %323 = vmatprep.mubr.bf16.mxu0 0
        %324 = vmatmul.mubr.bf16.gmra.mxu0 %v286
        %v325 = vpop.f32.mrf.mxu0
        %v326 = vadd.f32 0.0, %v325
        %v327 = vpop.f32.mrf.mxu0
        %v328 = vpop.f32.mrf.mxu0
        %v329 = vpop.f32.mrf.mxu0
        %330 = vdwg.mxu0
        %v331 = vadd.f32 %v274, %v326
        %v332 = vld [vmem:[%s2] sm:$0xff]
        %334 = vset.pattern.permute.xlu0 0
        %335 = vperm.xlu0 %334, %v332
        %v336 = vpop.permute.xlu0 %335
        %v338 = vadd.f32 %v331, %v336
        %339 = vst [vmem:[%s161] sm:$0xff] %v338
        %s340 = sand.u32 %s93, 1
        %s341 = scalar_lea.sflag [#allocation3], %s340
        %s342 = sand.u32 %s93, 1
        %s343 = smul.addr %s342, 8
        %s344 = scalar_lea.vmem [#allocation2], %s343
        // Predicated region
        $region33: #{tpu_custom_call.1} parent=31 // pred_check
          %p345 = pneg %p103
        $region34: #{tpu_custom_call.1} parent=31 // pred_check_branch
          %347 = sbr.rel (%p345) target = $region36
        $region35: #{tpu_custom_call.1} parent=31 // pred_region
          %s349 = ssub.s32 128, 128
          %350 = vsyncadd %s341, %s349
          %s351 = smul.addr %s17, 128
          %s352 = scalar_lea.hbm %s3, %s351
          %s354 = sshll.u32 %s344, 4
          %s355 = int_to_ptr.vmem [resolvable:$true] %s354
          %357 = dma.vmem_to_hbm [thread:$0]  %s355, 128, %s352, %s341
        $region36: #{tpu_custom_call.1} parent=31 // pred_fallthru
          _
      $region32: #{tpu_custom_call.1} parent=5 // pred_fallthru
        _
      %p358 = scmp.le.s32.totalorder 2, %s12
      // Predicated region
      $region37: #{tpu_custom_call.1} parent=5 // pred_check
        %p359 = pneg %p358
      $region38: #{tpu_custom_call.1} parent=5 // pred_check_branch
        %361 = sbr.rel (%p359) target = $region40
      $region39: #{tpu_custom_call.1} parent=5 // pred_region
        %s362 = ssub.s32 %s12, 2
        // Predicated region
        $region41: #{tpu_custom_call.1} parent=39 // pred_check
          %p363 = pneg %p109
        $region42: #{tpu_custom_call.1} parent=39 // pred_check_branch
          %365 = sbr.rel (%p363) target = $region44
        $region43: #{tpu_custom_call.1} parent=39 // pred_region
          %s366 = sand.u32 %s94, 1
          %s367 = scalar_lea.sflag [#allocation3], %s366
          %s368 = sand.u32 %s94, 1
          %s369 = smul.addr %s368, 8
          %s370 = scalar_lea.vmem [#allocation2], %s369
          %371 = dma.done %s367, 128
        $region44: #{tpu_custom_call.1} parent=39 // pred_fallthru
          _
      $region40: #{tpu_custom_call.1} parent=5 // pred_fallthru
        _
    $region6: #{tpu_custom_call.1} parent=1 // loop_footer
      %s16 = sadd.s32 1, %s12
    $region7: #{tpu_custom_call.1} parent=1 // loop_footer_branch
      %11 = sbr.rel target = $region3
    $region8: #{tpu_custom_call.1} parent=1 // loop_exit
      _
    %372 = vsyncpa [#allocation3], 1
    %s373 = scalar_lea.sflag [#allocation3], 1
    %374 = vsyncpa %s373, 1

</llo_original>
